<compile_context>
chip_gen: v5e
topology: v5e:2x2
jax: 0.10.0
libtpu: 0.0.40
codegen_flags: <defaults>
</compile_context>

<pallas_src>
import jax
import jax.numpy as jnp
from jax.experimental import pallas as pl
from jax.experimental.pallas import tpu as pltpu


# ------------------------------- kernel ------------------------------------ #

def _deconv_bn_silu_kernel(lhs_ref, w_ref, shift_ref, o_ref):
    # lhs_ref:   (TM, 9*C1)  bf16  im2col rows (one tile of flattened B*H*W)
    # w_ref:     (9*C1, 4*C2) bf16 per-tap deconv weight, BN scale folded in
    # shift_ref: (1, 4*C2)   f32   BN shift (beta - mean*scale), phase-packed
    # o_ref:     (TM, 4*C2)  f32   phase-packed output rows (lane-dense N=128)
    y = jnp.dot(lhs_ref[...], w_ref[...], preferred_element_type=jnp.float32)
    y = y + shift_ref[...]                                  # folded BN shift
    # SiLU: x * sigmoid(x); reciprocal on the EUP (approx) keeps VALU free.
    sig = pl.reciprocal(1.0 + jnp.exp(-y), approx=True)
    o_ref[...] = (y * sig).astype(o_ref.dtype)


# ------------------------------ wrapper ------------------------------------ #

def _round_up(x, m):
    return ((x + m - 1) // m) * m


def _choose_tile_m(M, K9, N4, max_bytes=8 * 1024 * 1024):
    """Row-tile size: multiple of 8, >=2 grid steps when possible, and small
    enough that double-buffered LHS (bf16) + output (f32) tiles stay well
    under the scoped-VMEM default (and v7x's 64 MiB physical VMEM)."""
    per_row_bytes = 2 * (K9 * 2) + 2 * (N4 * 4)   # 2x-buffered LHS + output
    cap = max(8, (max_bytes // per_row_bytes) // 8 * 8)
    tm = min(512, cap, _round_up(-(-M // 2), 8))  # at least 2 steps if M >= 16
    return max(8, tm)


def deconv_forward(x_nchw, w_taps, shift4, c2):
    B, C1, H, W = x_nchw.shape
    K9, N4 = 9 * C1, 4 * c2

    # ---- input-side plumbing (input is 4*C2/C1 x smaller than the output,
    # so this is cheap; XLA fuses transpose + pad + slice/concat) -----------
    x = jnp.transpose(x_nchw, (0, 2, 3, 1)).astype(jnp.float32)   # NHWC
    xp = jnp.pad(x, ((0, 0), (1, 1), (1, 1), (0, 0)))             # (B,H+2,W+2,C1)
    # 3x3 im2col in the wrapper (C1 is tiny): kernel becomes matmul+epilogue.
    patches = jnp.concatenate(
        [xp[:, dh:dh + H, dw:dw + W, :] for dh in range(3) for dw in range(3)],
        axis=-1)                                                   # (B,H,W,9*C1)
    M = B * H * W
    lhs = patches.reshape(M, K9).astype(jnp.bfloat16)

    # ---- row-tiled grid over flattened B*H*W --------------------------------
    TM = _choose_tile_m(M, K9, N4)
    Mpad = _round_up(M, TM)
    if Mpad != M:
        lhs = jnp.pad(lhs, ((0, Mpad - M), (0, 0)))

    packed = pl.pallas_call(
        _deconv_bn_silu_kernel,
        out_shape=jax.ShapeDtypeStruct((Mpad, N4), jnp.float32),
        grid=(Mpad // TM,),
        in_specs=[pl.BlockSpec((TM, K9), lambda m: (m, 0)),
                  pl.BlockSpec((K9, N4), lambda m: (0, 0)),   # VMEM-resident
                  pl.BlockSpec((1, N4), lambda m: (0, 0))],   # VMEM-resident
        out_specs=pl.BlockSpec((TM, N4), lambda m: (m, 0)),
        compiler_params=pltpu.CompilerParams(
            dimension_semantics=("parallel",)),
    )(lhs, w_taps, shift4)

    # ---- output-side plumbing: depth-to-space + NHWC->NCHW in ONE pass ------
    # packed[b, i, j, ph, pw, c] -> out[b, c, 2i+ph, 2j+pw]
    o = packed[:M].reshape(B, H, W, 2, 2, c2)
    o = jnp.transpose(o, (0, 5, 1, 3, 2, 4)).reshape(B, c2, 2 * H, 2 * W)
    return o


# ----------------------- parameter preparation ----------------------------- #

def fold_params(w_deconv, gamma, beta, run_mean, run_var, eps=1e-5):
    """w_deconv: PyTorch ConvTranspose2d weight layout, shape (C1, C2, 4, 4)."""
    C1, C2 = w_deconv.shape[0], w_deconv.shape[1]
    scale = gamma / jnp.sqrt(run_var + eps)                 # (C2,)
    shift = beta - run_mean * scale                         # (C2,)
    # Tap layout: w_taps[tap_h, tap_w, ci, (ph*2+pw)*C2 + co]
    # For output phase (ph, pw) and in-window offset (dh, dw) in {0,1}^2 the
    # deconv tap is W[ci, co, 3-2*dh-ph, 3-2*dw-pw] at 3x3 position (ph+dh, pw+dw).
    w_taps = jnp.zeros((3, 3, C1, 4 * C2), jnp.float32)
    for ph in range(2):
        for pw in range(2):
            col = (ph * 2 + pw) * C2
            for dh in range(2):
                for dw in range(2):
                    kh = 3 - 2 * dh - ph
                    kw = 3 - 2 * dw - pw
                    w_taps = w_taps.at[ph + dh, pw + dw, :, col:col + C2].set(
                        w_deconv[:, :, kh, kw] * scale[None, :])   # BN fold
    w_taps = w_taps.reshape(9 * C1, 4 * C2).astype(jnp.bfloat16)   # MXU operand
    shift4 = jnp.tile(shift, 4).reshape(1, 4 * C2).astype(jnp.float32)
    return w_taps, shift4


# -------------------------- pure-JAX reference ------------------------------ #

def reference_forward(x, w_deconv, gamma, beta, run_mean, run_var, eps=1e-5):
    # ConvTranspose2d(k=4, s=2, p=1, bias=False) via the lhs-dilated-conv identity.
    w_flip = jnp.transpose(jnp.flip(w_deconv, (2, 3)), (1, 0, 2, 3))  # (C2,C1,4,4)
    y = jax.lax.conv_general_dilated(
        x.astype(jnp.float32), w_flip,
        window_strides=(1, 1), padding=((2, 2), (2, 2)),
        lhs_dilation=(2, 2), rhs_dilation=(1, 1),
        dimension_numbers=("NCHW", "OIHW", "NCHW"),
        precision=jax.lax.Precision.HIGHEST)
    scale = gamma / jnp.sqrt(run_var + eps)
    shift = beta - run_mean * scale
    y = y * scale[None, :, None, None] + shift[None, :, None, None]
    return y * jax.nn.sigmoid(y)                            # SiLU


# --------------------------------- main ------------------------------------ #

if __name__ == "__main__":
    B, C1, H, W = 2, 4, 16, 16          # x: (2, 4, 16, 16) NCHW
    C2 = 32                             # 4*C2 = 128 -> lane-dense output store

    key = jax.random.PRNGKey(0)
    kx, kw, kg, kb, km, kv = jax.random.split(key, 6)
    x = jax.random.normal(kx, (B, C1, H, W), jnp.float32)
    w_deconv = jax.random.normal(kw, (C1, C2, 4, 4), jnp.float32) * 0.05
    gamma = 1.0 + 0.1 * jax.random.normal(kg, (C2,), jnp.float32)
    beta = 0.1 * jax.random.normal(kb, (C2,), jnp.float32)
    run_mean = 0.1 * jax.random.normal(km, (C2,), jnp.float32)
    run_var = 1.0 + 0.1 * jnp.abs(jax.random.normal(kv, (C2,), jnp.float32))

    w_taps, shift4 = fold_params(w_deconv, gamma, beta, run_mean, run_var)

    out = jax.block_until_ready(deconv_forward(x, w_taps, shift4, C2))
    assert out.shape == (B, C2, 2 * H, 2 * W), out.shape

    ref = jax.block_until_ready(
        reference_forward(x, w_deconv, gamma, beta, run_mean, run_var))
    # bf16 matmul operands + approx-reciprocal sigmoid -> relative tolerance.
    max_abs_err = float(jnp.max(jnp.abs(out - ref)))
    ref_scale = float(jnp.max(jnp.abs(ref)))
    assert max_abs_err <= 2e-2 * max(ref_scale, 1.0), (
        f"mismatch vs reference: abs={max_abs_err}, ref_max={ref_scale}")

    print("KERNEL_OK")
</pallas_src>

<mosaic_0001>
module attributes {stable_mosaic.version = 11 : i64} {
  func.func @_deconv_bn_silu_kernel(%arg0: i32, %arg1: memref<256x36xbf16, #tpu.memory_space<vmem>>, %arg2: memref<36x128xbf16, #tpu.memory_space<vmem>>, %arg3: memref<1x128xf32, #tpu.memory_space<vmem>>, %arg4: memref<256x128xf32, #tpu.memory_space<vmem>>) attributes {dimension_semantics = [#tpu.dimension_semantics<parallel>], iteration_bounds = array<i64: 2>, scalar_prefetch = 0 : i64, scratch_operands = 0 : i64, tpu.core_type = #tpu.core_type<tc>, window_params = [{transform_indices = @transform_0, window_bounds = array<i64: 256, 36>}, {pipeline_mode = #tpu.pipeline_mode<synchronous>, transform_indices = @transform_1, window_bounds = array<i64: 36, 128>}, {pipeline_mode = #tpu.pipeline_mode<synchronous>, transform_indices = @transform_2, window_bounds = array<i64: 1, 128>}, {transform_indices = @transform_3, window_bounds = array<i64: 256, 128>}]} {
    %c0 = arith.constant 0 : index
    %c0_0 = arith.constant 0 : index
    %0 = vector.load %arg1[%c0, %c0_0] : memref<256x36xbf16, #tpu.memory_space<vmem>>, vector<256x36xbf16>
    %c0_1 = arith.constant 0 : index
    %c0_2 = arith.constant 0 : index
    %1 = vector.load %arg2[%c0_1, %c0_2] : memref<36x128xbf16, #tpu.memory_space<vmem>>, vector<36x128xbf16>
    %cst = arith.constant dense<0.000000e+00> : vector<256x128xf32>
    %2 = tpu.matmul %0, %1, %cst {dimension_numbers = #tpu.dot_dimension_numbers<[1], [0], [0], [1], [0, 0, 1, 1], [], []>} : vector<256x36xbf16>, vector<36x128xbf16>, vector<256x128xf32> -> vector<256x128xf32>
    %c0_3 = arith.constant 0 : index
    %c0_4 = arith.constant 0 : index
    %3 = vector.load %arg3[%c0_3, %c0_4] : memref<1x128xf32, #tpu.memory_space<vmem>>, vector<1x128xf32>
    %4 = vector.broadcast %3 : vector<1x128xf32> to vector<256x128xf32>
    %5 = arith.addf %2, %4 : vector<256x128xf32>
    %cst_5 = arith.constant 0.000000e+00 : f32
    %6 = vector.broadcast %cst_5 : f32 to vector<256x128xf32>
    %7 = arith.subf %6, %5 : vector<256x128xf32>
    %8 = math.exp %7 : vector<256x128xf32>
    %cst_6 = arith.constant 1.000000e+00 : f32
    %9 = vector.broadcast %cst_6 : f32 to vector<256x128xf32>
    %10 = arith.addf %9, %8 : vector<256x128xf32>
    %11 = tpu.reciprocal %10 {approx = true} : vector<256x128xf32> -> vector<256x128xf32>
    %12 = arith.mulf %5, %11 : vector<256x128xf32>
    %c0_7 = arith.constant 0 : index
    %c0_8 = arith.constant 0 : index
    %13 = vector.load %arg4[%c0_7, %c0_8] : memref<256x128xf32, #tpu.memory_space<vmem>>, vector<256x128xf32>
    tpu.vector_store %arg4[%c0_7, %c0_8], %12 {strides = array<i32>} : memref<256x128xf32, #tpu.memory_space<vmem>>, vector<256x128xf32>,
    return
  }
  func.func @transform_0(%arg0: i32) -> (i32, i32) {
    %c0_i32 = arith.constant 0 : i32
    %c0_i32_0 = arith.constant 0 : i32
    return %arg0, %c0_i32 : i32, i32
  }
  func.func @transform_1(%arg0: i32) -> (i32, i32) {
    %c0_i32 = arith.constant 0 : i32
    %c0_i32_0 = arith.constant 0 : i32
    %c0_i32_1 = arith.constant 0 : i32
    return %c0_i32, %c0_i32_0 : i32, i32
  }
  func.func @transform_2(%arg0: i32) -> (i32, i32) {
    %c0_i32 = arith.constant 0 : i32
    %c0_i32_0 = arith.constant 0 : i32
    %c0_i32_1 = arith.constant 0 : i32
    return %c0_i32, %c0_i32_0 : i32, i32
  }
  func.func @transform_3(%arg0: i32) -> (i32, i32) {
    %c0_i32 = arith.constant 0 : i32
    %c0_i32_0 = arith.constant 0 : i32
    return %arg0, %c0_i32 : i32, i32
  }
}

</mosaic_0001>

<llo_original>
// kernel: tpu_custom_call.1
$region0: #{tpu_custom_call.1}
  #allocation0 [shape = 'u32[]', space=smem, size = 0x4, offset = 0x4, fixed_abs, tag = 'smem constant byte address 0x4 - core index']
  #allocation1 [shape = 'u32[72,128]{1,0:T(1,128)}', space=vmem, size = 0x9000, scoped, tag = 'internal scratch']
  %s0 = inlined_call_operand.vmem [shape: bf16[512,36], index: 0, kind: input, shape index: {}]
  %s1 = inlined_call_operand.vmem [shape: bf16[36,128], index: 1, kind: input, shape index: {}]
  %s2 = inlined_call_operand.vmem [shape: f32[1,128], index: 2, kind: input, shape index: {}]
  %s3 = inlined_call_operand.hbm [shape: f32[512,128], index: 3, kind: output, shape index: {}]
  %s4 = sld [smem:[#allocation0]]
  $region45: #{tpu_custom_call.1} parent=0
    _
  %s6 = ssub.s32 1, %s4
  %s7 = scalar_select 0, %s6, %s4
  $region1: #{tpu_custom_call.1} parent=0
    #allocation2 [shape = 'u8[262144]{0}', space=vmem, size = 0x40000, scoped, tag = 'output window, operand 0']
    #allocation3 [shape = 's32[2]{0}', space=sflag, size = 0x8, scoped, tag = 'scoped memory for tpu_custom_call.1']
    %8 = vsyncpa [#allocation3], 0
    %s9 = scalar_lea.sflag [#allocation3], 1
    %10 = vsyncpa %s9, 0
    loop: start=0, step=1, limit=4
    $region2: #{tpu_custom_call.1} parent=1 // loop_pre_header
      _
    $region3: #{tpu_custom_call.1} parent=1 // loop_header
      %s12 = sphi 0, %s16
      %p13 = scmp.ge.s32.totalorder %s12, 4
      %s22 = sphi 0, %s24
      %s25 = sphi 0, %s22
      %s26 = sphi 0, %s25
      %s42 = sphi 0, %s26
      %s46 = sphi 0, %s46
      %s48 = sphi 0, %s46
      %s49 = sphi 0, %s48
      %s63 = sphi 0, %s49
      %s67 = sphi 0, %s67
      %s69 = sphi 0, %s67
      %s70 = sphi 0, %s69
      %s84 = sphi 0, %s70
      %s90 = sphi 0, %s92
      %s93 = sphi 0, %s90
      %s94 = sphi 0, %s93
      %s110 = sphi 0, %s94
    $region4: #{tpu_custom_call.1} parent=1 // loop_header_branch
      %15 = sbr.rel (%p13) target = $region8
    $region5: #{tpu_custom_call.1} parent=1 // loop_body
      %s17 = ssub.s32 %s12, 1
      %s18 = ssub.s32 %s12, 2
      %s19 = sadd.s32 %s12, 1
      %s20 = ssub.s32 %s12, %s19
      %p21 = scmp.eq.s32.totalorder %s20, 0
      %s23 = sadd.s32 %s22, 1
      %s24 = scalar_select %p21, %s22, %s23
      %p27 = pneg %p21
      %p28 = scmp.eq.s32.totalorder %s12, 1
      %p29 = por %p27, %p28
      %p30 = scmp.ne.s32.totalorder %s22, %s25
      %p31 = scmp.eq.s32.totalorder %s12, 0
      %p32 = por %p30, %p31
      %p33 = scmp.ne.s32.totalorder %s22, %s25
      %p34 = scmp.eq.s32.totalorder %s17, 1
      %p35 = por %p33, %p34
      %p36 = scmp.ne.s32.totalorder %s25, %s26
      %p37 = scmp.eq.s32.totalorder %s17, 0
      %p38 = por %p36, %p37
      %p39 = scmp.ne.s32.totalorder %s25, %s26
      %p40 = scmp.eq.s32.totalorder %s18, 1
      %p41 = por %p39, %p40
      %p43 = scmp.ne.s32.totalorder %s26, %s42
      %p44 = scmp.eq.s32.totalorder %s18, 0
      %p45 = por %p43, %p44
      %s47 = sadd.s32 %s46, 1
      %p50 = scmp.eq.s32.totalorder %s12, 1
      %p51 = scmp.ne.s32.totalorder %s46, %s48
      %p52 = scmp.eq.s32.totalorder %s12, 0
      %p53 = por %p51, %p52
      %p54 = scmp.ne.s32.totalorder %s46, %s48
      %p55 = scmp.eq.s32.totalorder %s17, 1
      %p56 = por %p54, %p55
      %p57 = scmp.ne.s32.totalorder %s48, %s49
      %p58 = scmp.eq.s32.totalorder %s17, 0
      %p59 = por %p57, %p58
      %p60 = scmp.ne.s32.totalorder %s48, %s49
      %p61 = scmp.eq.s32.totalorder %s18, 1
      %p62 = por %p60, %p61
      %p64 = scmp.ne.s32.totalorder %s49, %s63
      %p65 = scmp.eq.s32.totalorder %s18, 0
      %p66 = por %p64, %p65
      %s68 = sadd.s32 %s67, 1
      %p71 = scmp.eq.s32.totalorder %s12, 1
      %p72 = scmp.ne.s32.totalorder %s67, %s69
      %p73 = scmp.eq.s32.totalorder %s12, 0
      %p74 = por %p72, %p73
      %p75 = scmp.ne.s32.totalorder %s67, %s69
      %p76 = scmp.eq.s32.totalorder %s17, 1
      %p77 = por %p75, %p76
      %p78 = scmp.ne.s32.totalorder %s69, %s70
      %p79 = scmp.eq.s32.totalorder %s17, 0
      %p80 = por %p78, %p79
      %p81 = scmp.ne.s32.totalorder %s69, %s70
      %p82 = scmp.eq.s32.totalorder %s18, 1
      %p83 = por %p81, %p82
      %p85 = scmp.ne.s32.totalorder %s70, %s84
      %p86 = scmp.eq.s32.totalorder %s18, 0
      %p87 = por %p85, %p86
      %s88 = ssub.s32 %s12, %s19
      %p89 = scmp.eq.s32.totalorder %s88, 0
      %s91 = sadd.s32 %s90, 1
      %s92 = scalar_select %p89, %s90, %s91
      %p95 = pneg %p89
      %p96 = scmp.eq.s32.totalorder %s12, 1
      %p97 = por %p95, %p96
      %p98 = scmp.ne.s32.totalorder %s90, %s93
      %p99 = scmp.eq.s32.totalorder %s12, 0
      %p100 = por %p98, %p99
      %p101 = scmp.ne.s32.totalorder %s90, %s93
      %p102 = scmp.eq.s32.totalorder %s17, 1
      %p103 = por %p101, %p102
      %p104 = scmp.ne.s32.totalorder %s93, %s94
      %p105 = scmp.eq.s32.totalorder %s17, 0
      %p106 = por %p104, %p105
      %p107 = scmp.ne.s32.totalorder %s93, %s94
      %p108 = scmp.eq.s32.totalorder %s18, 1
      %p109 = por %p107, %p108
      %p111 = scmp.ne.s32.totalorder %s94, %s110
      %p112 = scmp.eq.s32.totalorder %s18, 0
      %p113 = por %p111, %p112
      %p114 = scmp.le.s32.totalorder 1, %s12
      %p115 = scmp.lt.s32.totalorder %s12, 3
      %p116 = pnand %p114, %p115
      %p117 = pneg %p116
      // Predicated region
      $region9: #{tpu_custom_call.1} parent=5 // pred_check
        _
      $region10: #{tpu_custom_call.1} parent=5 // pred_check_branch
        %119 = sbr.rel (%p116) target = $region12
      $region11: #{tpu_custom_call.1} parent=5 // pred_region
        %s120 = ssub.s32 %s12, 1
        // Predicated region
        $region13: #{tpu_custom_call.1} parent=11 // pred_check
          %p121 = pneg %p59
        $region14: #{tpu_custom_call.1} parent=11 // pred_check_branch
          %123 = sbr.rel (%p121) target = $region16
        $region15: #{tpu_custom_call.1} parent=11 // pred_region
          _
        $region16: #{tpu_custom_call.1} parent=11 // pred_fallthru
          _
        // Predicated region
        $region17: #{tpu_custom_call.1} parent=11 // pred_check
          %p124 = pneg %p80
        $region18: #{tpu_custom_call.1} parent=11 // pred_check_branch
          %126 = sbr.rel (%p124) target = $region20
        $region19: #{tpu_custom_call.1} parent=11 // pred_region
          _
        $region20: #{tpu_custom_call.1} parent=11 // pred_fallthru
          _
      $region12: #{tpu_custom_call.1} parent=5 // pred_fallthru
        _
      %p127 = scmp.lt.s32.totalorder %s12, 2
      // Predicated region
      $region21: #{tpu_custom_call.1} parent=5 // pred_check
        %p128 = pneg %p127
      $region22: #{tpu_custom_call.1} parent=5 // pred_check_branch
        %130 = sbr.rel (%p128) target = $region24
      $region23: #{tpu_custom_call.1} parent=5 // pred_region
        // Predicated region
        $region25: #{tpu_custom_call.1} parent=23 // pred_check
          %p131 = pneg %p32
        $region26: #{tpu_custom_call.1} parent=23 // pred_check_branch
          %133 = sbr.rel (%p131) target = $region28
        $region27: #{tpu_custom_call.1} parent=23 // pred_region
          %s134 = smul.u32 32, %s12
          %p135 = scmp.lt.s32.totalorder %s134, 63
          %s136 = scalar_select %p135, %s134, 63
          %s137 = smul.addr %s136, 4
          %s138 = scalar_lea.vmem %s0, %s137
          %s139 = smul.u32 32, %s12
        $region28: #{tpu_custom_call.1} parent=23 // pred_fallthru
          _
      $region24: #{tpu_custom_call.1} parent=5 // pred_fallthru
        _
      %p140 = scmp.le.s32.totalorder 1, %s12
      %p141 = scmp.lt.s32.totalorder %s12, 3
      %p142 = pnand %p140, %p141
      %p143 = pneg %p142
      // Predicated region
      $region29: #{tpu_custom_call.1} parent=5 // pred_check
        _
      $region30: #{tpu_custom_call.1} parent=5 // pred_check_branch
        %145 = sbr.rel (%p142) target = $region32
      $region31: #{tpu_custom_call.1} parent=5 // pred_region
        %s146 = ssub.s32 %s12, 1
        %s147 = smul.u32 32, %s17
        %p148 = scmp.lt.s32.totalorder %s147, 63
        %s149 = scalar_select %p148, %s147, 63
        %s150 = smul.addr %s149, 4
        %s151 = scalar_lea.vmem %s0, %s150
        %p152 = pneg %p38
        %p153 = pneg %p35
        %p154 = pneg %p59
        %p155 = pneg %p56
        %p156 = pneg %p80
        %p157 = pneg %p77
        %p158 = pneg %p106
        %p159 = pneg %p103
        %s160 = sand.u32 %s93, 1
        %s161 = scalar_lea.sflag [#allocation3], %s160
        %s162 = sand.u32 %s93, 1
        %s163 = smul.addr %s162, 256
        %s164 = scalar_lea.vmem [#allocation2], %s163
        %s165 = smul.u32 32, %s17
        %p166 = scmp.lt.s32.totalorder %s165, 63
        %s167 = scalar_select %p166, %s165, 63
        %s168 = smul.addr %s167, 4
        %s169 = scalar_lea.vmem %s0, %s168
        %s170 = smul.u32 32, %s17
        %s171 = smul.u32 32, %s17
        %v173 = vld [vmem:[%s169] sm:$0xf]
        %v174 = vld [vmem:[%s169 + $0x4] sm:$0xf]
        %v175 = vld [vmem:[%s169 + $0x8] sm:$0xf]
        %v176 = vld [vmem:[%s169 + $0xc] sm:$0xf]
        %v177 = vld [vmem:[%s169 + $0x10] sm:$0xf]
        %v178 = vld [vmem:[%s169 + $0x14] sm:$0xf]
        %v179 = vld [vmem:[%s169 + $0x18] sm:$0xf]
        %v180 = vld [vmem:[%s169 + $0x1c] sm:$0xf]
        %v181 = vld [vmem:[%s169 + $0x20] sm:$0xf]
        %v182 = vld [vmem:[%s169 + $0x24] sm:$0xf]
        %v183 = vld [vmem:[%s169 + $0x28] sm:$0xf]
        %v184 = vld [vmem:[%s169 + $0x2c] sm:$0xf]
        %v185 = vld [vmem:[%s169 + $0x30] sm:$0xf]
        %v186 = vld [vmem:[%s169 + $0x34] sm:$0xf]
        %v187 = vld [vmem:[%s169 + $0x38] sm:$0xf]
        %v188 = vld [vmem:[%s169 + $0x3c] sm:$0xf]
        %v189 = vld [vmem:[%s169 + $0x40] sm:$0xf]
        %v190 = vld [vmem:[%s169 + $0x44] sm:$0xf]
        %v191 = vld [vmem:[%s169 + $0x48] sm:$0xf]
        %v192 = vld [vmem:[%s169 + $0x4c] sm:$0xf]
        %v193 = vld [vmem:[%s169 + $0x50] sm:$0xf]
        %v194 = vld [vmem:[%s169 + $0x54] sm:$0xf]
        %v195 = vld [vmem:[%s169 + $0x58] sm:$0xf]
        %v196 = vld [vmem:[%s169 + $0x5c] sm:$0xf]
        %v197 = vld [vmem:[%s169 + $0x60] sm:$0xf]
        %v198 = vld [vmem:[%s169 + $0x64] sm:$0xf]
        %v199 = vld [vmem:[%s169 + $0x68] sm:$0xf]
        %v200 = vld [vmem:[%s169 + $0x6c] sm:$0xf]
        %v201 = vld [vmem:[%s169 + $0x70] sm:$0xf]
        %v202 = vld [vmem:[%s169 + $0x74] sm:$0xf]
        %v203 = vld [vmem:[%s169 + $0x78] sm:$0xf]
        %v204 = vld [vmem:[%s169 + $0x7c] sm:$0xf]
        %v205 = vld [vmem:[%s1] sm:$0xf]
        %v206 = vld [vmem:[%s1 + $0x4] sm:$0xf]
        %v207 = vld [vmem:[%s1 + $0x8] sm:$0xf]
        %v208 = vld [vmem:[%s1 + $0xc] sm:$0xf]
        %v209 = vld [vmem:[%s1 + $0x10] sm:$0x3]
        %v210 = vld [vmem:[%s2] sm:$0x1]
        %v212 = vperm.slane %v210, 0
        %v246 = vunpack.c.l.b16 %v173
        %v247 = vunpack.c.l.b16 %v174
        %v248 = vunpack.c.l.b16 %v175
        %v249 = vunpack.c.l.b16 %v176
        %v250 = vunpack.c.l.b16 %v177
        %v251 = vunpack.c.l.b16 %v178
        %v252 = vunpack.c.l.b16 %v179
        %v253 = vunpack.c.l.b16 %v180
        %v254 = vunpack.c.l.b16 %v181
        %v255 = vunpack.c.l.b16 %v182
        %v256 = vunpack.c.l.b16 %v183
        %v257 = vunpack.c.l.b16 %v184
        %v258 = vunpack.c.l.b16 %v185
        %v259 = vunpack.c.l.b16 %v186
        %v260 = vunpack.c.l.b16 %v187
        %v261 = vunpack.c.l.b16 %v188
        %v262 = vunpack.c.l.b16 %v189
        %v263 = vunpack.c.l.b16 %v190
        %v264 = vunpack.c.l.b16 %v191
        %v265 = vunpack.c.l.b16 %v192
        %v266 = vunpack.c.l.b16 %v193
        %v267 = vunpack.c.l.b16 %v194
        %v268 = vunpack.c.l.b16 %v195
        %v269 = vunpack.c.l.b16 %v196
        %v270 = vunpack.c.l.b16 %v197
        %v271 = vunpack.c.l.b16 %v198
        %v272 = vunpack.c.l.b16 %v199
        %v273 = vunpack.c.l.b16 %v200
        %v274 = vunpack.c.l.b16 %v201
        %v275 = vunpack.c.l.b16 %v202
        %v276 = vunpack.c.l.b16 %v203
        %v277 = vunpack.c.l.b16 %v204
        %v278 = vpack.c.b16 %v247, %v246
        %v279 = vpack.c.b16 %v249, %v248
        %v280 = vpack.c.b16 %v251, %v250
        %v281 = vpack.c.b16 %v253, %v252
        %v282 = vpack.c.b16 %v255, %v254
        %v283 = vpack.c.b16 %v257, %v256
        %v284 = vpack.c.b16 %v259, %v258
        %v285 = vpack.c.b16 %v261, %v260
        %v286 = vpack.c.b16 %v263, %v262
        %v287 = vpack.c.b16 %v265, %v264
        %v288 = vpack.c.b16 %v267, %v266
        %v289 = vpack.c.b16 %v269, %v268
        %v290 = vpack.c.b16 %v271, %v270
        %v291 = vpack.c.b16 %v273, %v272
        %v292 = vpack.c.b16 %v275, %v274
        %v293 = vpack.c.b16 %v277, %v276
        %v299 = vunpack.c.l.b16 %v205
        %v300 = vunpack.c.l.b16 %v206
        %v301 = vunpack.c.l.b16 %v207
        %v302 = vunpack.c.l.b16 %v208
        %v303 = vunpack.c.l.b16 %v209
        %v304 = vpack.c.b16 %v300, %v299
        %v305 = vpack.c.b16 %v302, %v301
        %v306 = vpack.c.b16 %v303, %v303
        %vm309 = vcmask 293888
        %v311 = vsel %vm309, %v278, 0
        %v314 = vsel %vm309, %v279, 0
        %v317 = vsel %vm309, %v280, 0
        %v320 = vsel %vm309, %v281, 0
        %v323 = vsel %vm309, %v282, 0
        %v326 = vsel %vm309, %v283, 0
        %v329 = vsel %vm309, %v284, 0
        %v332 = vsel %vm309, %v285, 0
        %v335 = vsel %vm309, %v286, 0
        %v338 = vsel %vm309, %v287, 0
        %v341 = vsel %vm309, %v288, 0
        %v344 = vsel %vm309, %v289, 0
        %v347 = vsel %vm309, %v290, 0
        %v350 = vsel %vm309, %v291, 0
        %v353 = vsel %vm309, %v292, 0
        %v356 = vsel %vm309, %v293, 0
        %vm358 = vcmask 1041408
        %v360 = vsel %vm358, %v306, 0
        %362 = vmatpush.bf16.msra.mxu0 0
        %363 = vmatpush.bf16.msra.mxu0 0
        %364 = vmatpush.bf16.msra.mxu0 0
        %365 = vmatpush.bf16.msra.mxu0 0
        %366 = vmatpush.bf16.msra.mxu0 0
        %367 = vmatpush.bf16.msra.mxu0 %v360
        %368 = vmatpush.bf16.msra.mxu0 %v305
        %369 = vmatpush.bf16.msra.mxu0 %v304
        %370 = vmatmul.bf16.gmra.mxu0 %v311
        %v371 = vpop.f32.mrf.mxu0
        %v372 = vadd.f32 %v212, %v371
        %v373 = vpop.f32.mrf.mxu0
        %v374 = vadd.f32 %v212, %v373
        %375 = vmatmul.bf16.gmra.mxu0 %v314
        %v376 = vpop.f32.mrf.mxu0
        %v377 = vadd.f32 %v212, %v376
        %v378 = vpop.f32.mrf.mxu0
        %v379 = vadd.f32 %v212, %v378
        %380 = vmatmul.bf16.gmra.mxu0 %v317
        %v381 = vpop.f32.mrf.mxu0
        %v382 = vadd.f32 %v212, %v381
        %v383 = vpop.f32.mrf.mxu0
        %v384 = vadd.f32 %v212, %v383
        %385 = vmatmul.bf16.gmra.mxu0 %v320
        %v386 = vpop.f32.mrf.mxu0
        %v387 = vadd.f32 %v212, %v386
        %v388 = vpop.f32.mrf.mxu0
        %v389 = vadd.f32 %v212, %v388
        %390 = vmatmul.bf16.gmra.mxu0 %v323
        %v391 = vpop.f32.mrf.mxu0
        %v392 = vadd.f32 %v212, %v391
        %v393 = vpop.f32.mrf.mxu0
        %v394 = vadd.f32 %v212, %v393
        %395 = vmatmul.bf16.gmra.mxu0 %v326
        %v396 = vpop.f32.mrf.mxu0
        %v397 = vadd.f32 %v212, %v396
        %v398 = vpop.f32.mrf.mxu0
        %v399 = vadd.f32 %v212, %v398
        %400 = vmatmul.bf16.gmra.mxu0 %v329
        %v401 = vpop.f32.mrf.mxu0
        %v402 = vadd.f32 %v212, %v401
        %v403 = vpop.f32.mrf.mxu0
        %v404 = vadd.f32 %v212, %v403
        %405 = vmatmul.bf16.gmra.mxu0 %v332
        %v406 = vpop.f32.mrf.mxu0
        %v407 = vadd.f32 %v212, %v406
        %v408 = vpop.f32.mrf.mxu0
        %v409 = vadd.f32 %v212, %v408
        %410 = vmatmul.bf16.gmra.mxu0 %v335
        %v411 = vpop.f32.mrf.mxu0
        %v412 = vadd.f32 %v212, %v411
        %v413 = vpop.f32.mrf.mxu0
        %v414 = vadd.f32 %v212, %v413
        %415 = vmatmul.bf16.gmra.mxu0 %v338
        %v416 = vpop.f32.mrf.mxu0
        %v417 = vadd.f32 %v212, %v416
        %v418 = vpop.f32.mrf.mxu0
        %v419 = vadd.f32 %v212, %v418
        %420 = vmatmul.bf16.gmra.mxu0 %v341
        %v421 = vpop.f32.mrf.mxu0
        %v422 = vadd.f32 %v212, %v421
        %v423 = vpop.f32.mrf.mxu0
        %v424 = vadd.f32 %v212, %v423
        %425 = vmatmul.bf16.gmra.mxu0 %v344
        %v426 = vpop.f32.mrf.mxu0
        %v427 = vadd.f32 %v212, %v426
        %v428 = vpop.f32.mrf.mxu0
        %v429 = vadd.f32 %v212, %v428
        %430 = vmatmul.bf16.gmra.mxu0 %v347
        %v431 = vpop.f32.mrf.mxu0
        %v432 = vadd.f32 %v212, %v431
        %v433 = vpop.f32.mrf.mxu0
        %v434 = vadd.f32 %v212, %v433
        %435 = vmatmul.bf16.gmra.mxu0 %v350
        %v436 = vpop.f32.mrf.mxu0
        %v437 = vadd.f32 %v212, %v436
        %v438 = vpop.f32.mrf.mxu0
        %v439 = vadd.f32 %v212, %v438
        %440 = vmatmul.bf16.gmra.mxu0 %v353
        %v441 = vpop.f32.mrf.mxu0
        %v442 = vadd.f32 %v212, %v441
        %v443 = vpop.f32.mrf.mxu0
        %v444 = vadd.f32 %v212, %v443
        %445 = vmatmul.bf16.gmra.mxu0 %v356
        %v446 = vpop.f32.mrf.mxu0
        %v447 = vadd.f32 %v212, %v446
        %v448 = vpop.f32.mrf.mxu0
        %v449 = vadd.f32 %v212, %v448
        %450 = vdwg.mxu0
        %v451 = vsub.f32 0.0, %v372
        %v452 = vsub.f32 0.0, %v374
        %v453 = vsub.f32 0.0, %v377
        %v454 = vsub.f32 0.0, %v379
        %v455 = vsub.f32 0.0, %v382
        %v456 = vsub.f32 0.0, %v384
        %v457 = vsub.f32 0.0, %v387
        %v458 = vsub.f32 0.0, %v389
        %v459 = vsub.f32 0.0, %v392
        %v460 = vsub.f32 0.0, %v394
        %v461 = vsub.f32 0.0, %v397
        %v462 = vsub.f32 0.0, %v399
        %v463 = vsub.f32 0.0, %v402
        %v464 = vsub.f32 0.0, %v404
        %v465 = vsub.f32 0.0, %v407
        %v466 = vsub.f32 0.0, %v409
        %v467 = vsub.f32 0.0, %v412
        %v468 = vsub.f32 0.0, %v414
        %v469 = vsub.f32 0.0, %v417
        %v470 = vsub.f32 0.0, %v419
        %v471 = vsub.f32 0.0, %v422
        %v472 = vsub.f32 0.0, %v424
        %v473 = vsub.f32 0.0, %v427
        %v474 = vsub.f32 0.0, %v429
        %v475 = vsub.f32 0.0, %v432
        %v476 = vsub.f32 0.0, %v434
        %v477 = vsub.f32 0.0, %v437
        %v478 = vsub.f32 0.0, %v439
        %v479 = vsub.f32 0.0, %v442
        %v480 = vsub.f32 0.0, %v444
        %v481 = vsub.f32 0.0, %v447
        %v482 = vsub.f32 0.0, %v449
        %v483 = vmul.f32 %v451, 1.442695
        %v484 = vpow.pop %v483
        %v485 = vmul.f32 %v452, 1.442695
        %v486 = vpow.pop %v485
        %v487 = vmul.f32 %v453, 1.442695
        %v488 = vpow.pop %v487
        %v489 = vmul.f32 %v454, 1.442695
        %v490 = vpow.pop %v489
        %v491 = vmul.f32 %v455, 1.442695
        %v492 = vpow.pop %v491
        %v493 = vmul.f32 %v456, 1.442695
        %v494 = vpow.pop %v493
        %v495 = vmul.f32 %v457, 1.442695
        %v496 = vpow.pop %v495
        %v497 = vmul.f32 %v458, 1.442695
        %v498 = vpow.pop %v497
        %v499 = vmul.f32 %v459, 1.442695
        %v500 = vpow.pop %v499
        %v501 = vmul.f32 %v460, 1.442695
        %v502 = vpow.pop %v501
        %v503 = vmul.f32 %v461, 1.442695
        %v504 = vpow.pop %v503
        %v505 = vmul.f32 %v462, 1.442695
        %v506 = vpow.pop %v505
        %v507 = vmul.f32 %v463, 1.442695
        %v508 = vpow.pop %v507
        %v509 = vmul.f32 %v464, 1.442695
        %v510 = vpow.pop %v509
        %v511 = vmul.f32 %v465, 1.442695
        %v512 = vpow.pop %v511
        %v513 = vmul.f32 %v466, 1.442695
        %v514 = vpow.pop %v513
        %v515 = vmul.f32 %v467, 1.442695
        %v516 = vpow.pop %v515
        %v517 = vmul.f32 %v468, 1.442695
        %v518 = vpow.pop %v517
        %v519 = vmul.f32 %v469, 1.442695
        %v520 = vpow.pop %v519
        %v521 = vmul.f32 %v470, 1.442695
        %v522 = vpow.pop %v521
        %v523 = vmul.f32 %v471, 1.442695
        %v524 = vpow.pop %v523
        %v525 = vmul.f32 %v472, 1.442695
        %v526 = vpow.pop %v525
        %v527 = vmul.f32 %v473, 1.442695
        %v528 = vpow.pop %v527
        %v529 = vmul.f32 %v474, 1.442695
        %v530 = vpow.pop %v529
        %v531 = vmul.f32 %v475, 1.442695
        %v532 = vpow.pop %v531
        %v533 = vmul.f32 %v476, 1.442695
        %v534 = vpow.pop %v533
        %v535 = vmul.f32 %v477, 1.442695
        %v536 = vpow.pop %v535
        %v537 = vmul.f32 %v478, 1.442695
        %v538 = vpow.pop %v537
        %v539 = vmul.f32 %v479, 1.442695
        %v540 = vpow.pop %v539
        %v541 = vmul.f32 %v480, 1.442695
        %v542 = vpow.pop %v541
        %v543 = vmul.f32 %v481, 1.442695
        %v544 = vpow.pop %v543
        %v545 = vmul.f32 %v482, 1.442695
        %v546 = vpow.pop %v545
        %v547 = vadd.f32 %v484, 1.0
        %v548 = vadd.f32 %v486, 1.0
        %v549 = vadd.f32 %v488, 1.0
        %v550 = vadd.f32 %v490, 1.0
        %v551 = vadd.f32 %v492, 1.0
        %v552 = vadd.f32 %v494, 1.0
        %v553 = vadd.f32 %v496, 1.0
        %v554 = vadd.f32 %v498, 1.0
        %v555 = vadd.f32 %v500, 1.0
        %v556 = vadd.f32 %v502, 1.0
        %v557 = vadd.f32 %v504, 1.0
        %v558 = vadd.f32 %v506, 1.0
        %v559 = vadd.f32 %v508, 1.0
        %v560 = vadd.f32 %v510, 1.0
        %v561 = vadd.f32 %v512, 1.0
        %v562 = vadd.f32 %v514, 1.0
        %v563 = vadd.f32 %v516, 1.0
        %v564 = vadd.f32 %v518, 1.0
        %v565 = vadd.f32 %v520, 1.0
        %v566 = vadd.f32 %v522, 1.0
        %v567 = vadd.f32 %v524, 1.0
        %v568 = vadd.f32 %v526, 1.0
        %v569 = vadd.f32 %v528, 1.0
        %v570 = vadd.f32 %v530, 1.0
        %v571 = vadd.f32 %v532, 1.0
        %v572 = vadd.f32 %v534, 1.0
        %v573 = vadd.f32 %v536, 1.0
        %v574 = vadd.f32 %v538, 1.0
        %v575 = vadd.f32 %v540, 1.0
        %v576 = vadd.f32 %v542, 1.0
        %v577 = vadd.f32 %v544, 1.0
        %v578 = vadd.f32 %v546, 1.0
        %v579 = vrcp.pop %v547
        %v580 = vrcp.pop %v548
        %v581 = vrcp.pop %v549
        %v582 = vrcp.pop %v550
        %v583 = vrcp.pop %v551
        %v584 = vrcp.pop %v552
        %v585 = vrcp.pop %v553
        %v586 = vrcp.pop %v554
        %v587 = vrcp.pop %v555
        %v588 = vrcp.pop %v556
        %v589 = vrcp.pop %v557
        %v590 = vrcp.pop %v558
        %v591 = vrcp.pop %v559
        %v592 = vrcp.pop %v560
        %v593 = vrcp.pop %v561
        %v594 = vrcp.pop %v562
        %v595 = vrcp.pop %v563
        %v596 = vrcp.pop %v564
        %v597 = vrcp.pop %v565
        %v598 = vrcp.pop %v566
        %v599 = vrcp.pop %v567
        %v600 = vrcp.pop %v568
        %v601 = vrcp.pop %v569
        %v602 = vrcp.pop %v570
        %v603 = vrcp.pop %v571
        %v604 = vrcp.pop %v572
        %v605 = vrcp.pop %v573
        %v606 = vrcp.pop %v574
        %v607 = vrcp.pop %v575
        %v608 = vrcp.pop %v576
        %v609 = vrcp.pop %v577
        %v610 = vrcp.pop %v578
        %v611 = vmul.f32 %v372, %v579
        %v612 = vmul.f32 %v374, %v580
        %v613 = vmul.f32 %v377, %v581
        %v614 = vmul.f32 %v379, %v582
        %v615 = vmul.f32 %v382, %v583
        %v616 = vmul.f32 %v384, %v584
        %v617 = vmul.f32 %v387, %v585
        %v618 = vmul.f32 %v389, %v586
        %v619 = vmul.f32 %v392, %v587
        %v620 = vmul.f32 %v394, %v588
        %v621 = vmul.f32 %v397, %v589
        %v622 = vmul.f32 %v399, %v590
        %v623 = vmul.f32 %v402, %v591
        %v624 = vmul.f32 %v404, %v592
        %v625 = vmul.f32 %v407, %v593
        %v626 = vmul.f32 %v409, %v594
        %v627 = vmul.f32 %v412, %v595
        %v628 = vmul.f32 %v414, %v596
        %v629 = vmul.f32 %v417, %v597
        %v630 = vmul.f32 %v419, %v598
        %v631 = vmul.f32 %v422, %v599
        %v632 = vmul.f32 %v424, %v600
        %v633 = vmul.f32 %v427, %v601
        %v634 = vmul.f32 %v429, %v602
        %v635 = vmul.f32 %v432, %v603
        %v636 = vmul.f32 %v434, %v604
        %v637 = vmul.f32 %v437, %v605
        %v638 = vmul.f32 %v439, %v606
        %v639 = vmul.f32 %v442, %v607
        %v640 = vmul.f32 %v444, %v608
        %v641 = vmul.f32 %v447, %v609
        %v642 = vmul.f32 %v449, %v610
        %643 = vst [vmem:[%s164] sm:$0xff] %v611
        %644 = vst [vmem:[%s164 + $0x8] sm:$0xff] %v612
        %645 = vst [vmem:[%s164 + $0x10] sm:$0xff] %v613
        %646 = vst [vmem:[%s164 + $0x18] sm:$0xff] %v614
        %647 = vst [vmem:[%s164 + $0x20] sm:$0xff] %v615
        %648 = vst [vmem:[%s164 + $0x28] sm:$0xff] %v616
        %649 = vst [vmem:[%s164 + $0x30] sm:$0xff] %v617
        %650 = vst [vmem:[%s164 + $0x38] sm:$0xff] %v618
        %651 = vst [vmem:[%s164 + $0x40] sm:$0xff] %v619
        %652 = vst [vmem:[%s164 + $0x48] sm:$0xff] %v620
        %653 = vst [vmem:[%s164 + $0x50] sm:$0xff] %v621
        %654 = vst [vmem:[%s164 + $0x58] sm:$0xff] %v622
        %655 = vst [vmem:[%s164 + $0x60] sm:$0xff] %v623
        %656 = vst [vmem:[%s164 + $0x68] sm:$0xff] %v624
        %657 = vst [vmem:[%s164 + $0x70] sm:$0xff] %v625
        %658 = vst [vmem:[%s164 + $0x78] sm:$0xff] %v626
        %659 = vst [vmem:[%s164 + $0x80] sm:$0xff] %v627
        %660 = vst [vmem:[%s164 + $0x88] sm:$0xff] %v628
        %661 = vst [vmem:[%s164 + $0x90] sm:$0xff] %v629
        %662 = vst [vmem:[%s164 + $0x98] sm:$0xff] %v630
        %663 = vst [vmem:[%s164 + $0xa0] sm:$0xff] %v631
        %664 = vst [vmem:[%s164 + $0xa8] sm:$0xff] %v632
        %665 = vst [vmem:[%s164 + $0xb0] sm:$0xff] %v633
        %666 = vst [vmem:[%s164 + $0xb8] sm:$0xff] %v634
        %667 = vst [vmem:[%s164 + $0xc0] sm:$0xff] %v635
        %668 = vst [vmem:[%s164 + $0xc8] sm:$0xff] %v636
        %669 = vst [vmem:[%s164 + $0xd0] sm:$0xff] %v637
        %670 = vst [vmem:[%s164 + $0xd8] sm:$0xff] %v638
        %671 = vst [vmem:[%s164 + $0xe0] sm:$0xff] %v639
        %672 = vst [vmem:[%s164 + $0xe8] sm:$0xff] %v640
        %673 = vst [vmem:[%s164 + $0xf0] sm:$0xff] %v641
        %674 = vst [vmem:[%s164 + $0xf8] sm:$0xff] %v642
        %s675 = sand.u32 %s93, 1
        %s676 = scalar_lea.sflag [#allocation3], %s675
        %s677 = sand.u32 %s93, 1
        %s678 = smul.addr %s677, 256
        %s679 = scalar_lea.vmem [#allocation2], %s678
        // Predicated region
        $region33: #{tpu_custom_call.1} parent=31 // pred_check
          %p680 = pneg %p103
        $region34: #{tpu_custom_call.1} parent=31 // pred_check_branch
          %682 = sbr.rel (%p680) target = $region36
        $region35: #{tpu_custom_call.1} parent=31 // pred_region
          %s683 = smul.u32 32, %s17
          %685 = vsyncadd %s676, 0
          %s686 = smul.addr %s683, 8
          %s687 = scalar_lea.hbm %s3, %s686
          %s688 = sshll.u32 %s679, 4
          %s689 = int_to_ptr.vmem [resolvable:$true] %s688
          %s690 = sshll.u32 %s687, 4
          %s691 = int_to_ptr.hbm [resolvable:$true] %s690
          %696 = dma.vmem_to_hbm [thread:$0]  %s689, 4096, %s691, %s676, 128, 128, 8
        $region36: #{tpu_custom_call.1} parent=31 // pred_fallthru
          _
      $region32: #{tpu_custom_call.1} parent=5 // pred_fallthru
        _
      %p697 = scmp.le.s32.totalorder 2, %s12
      // Predicated region
      $region37: #{tpu_custom_call.1} parent=5 // pred_check
        %p698 = pneg %p697
      $region38: #{tpu_custom_call.1} parent=5 // pred_check_branch
        %700 = sbr.rel (%p698) target = $region40
      $region39: #{tpu_custom_call.1} parent=5 // pred_region
        %s701 = ssub.s32 %s12, 2
        // Predicated region
        $region41: #{tpu_custom_call.1} parent=39 // pred_check
          %p702 = pneg %p109
        $region42: #{tpu_custom_call.1} parent=39 // pred_check_branch
          %704 = sbr.rel (%p702) target = $region44
        $region43: #{tpu_custom_call.1} parent=39 // pred_region
          %s705 = sand.u32 %s94, 1
          %s706 = scalar_lea.sflag [#allocation3], %s705
          %s707 = sand.u32 %s94, 1
          %s708 = smul.addr %s707, 256
          %s709 = scalar_lea.vmem [#allocation2], %s708
          %711 = dma.done %s706, 4096
        $region44: #{tpu_custom_call.1} parent=39 // pred_fallthru
          _
      $region40: #{tpu_custom_call.1} parent=5 // pred_fallthru
        _
    $region6: #{tpu_custom_call.1} parent=1 // loop_footer
      %s16 = sadd.s32 1, %s12
    $region7: #{tpu_custom_call.1} parent=1 // loop_footer_branch
      %11 = sbr.rel target = $region3
    $region8: #{tpu_custom_call.1} parent=1 // loop_exit
      _
    %712 = vsyncpa [#allocation3], 1
    %s713 = scalar_lea.sflag [#allocation3], 1
    %714 = vsyncpa %s713, 1

</llo_original>
